<compile_context>
chip_gen: v7x
topology: tpu7x:2x2x1
jax: 0.10.0
libtpu: 0.0.40
codegen_flags: <defaults>
</compile_context>

<pallas_src>
import jax
import jax.numpy as jnp
from jax import lax
from jax.experimental import pallas as pl
from jax.experimental.pallas import tpu as pltpu


# ---------------------------------------------------------------------------
# Stage 1: emb = Linear(silu(cond)); output (1 + scale) and shift once.
# ---------------------------------------------------------------------------
def _silu_linear_kernel(cond_ref, w_ref, sp1_ref, shift_ref, acc_ref):
    k = pl.program_id(0)

    @pl.when(k == 0)
    def _():
        acc_ref[...] = jnp.zeros_like(acc_ref)

    c = cond_ref[...]                                      # (B, TK)
    silu = (c * jax.nn.sigmoid(c)).astype(sp1_ref.dtype)   # matches .to(x.dtype)
    # Weight stays in torch (2E, C) layout; contract along C (dim 1 of both),
    # so no (2E, C) -> (C, 2E) transpose is ever materialized in HBM.
    acc_ref[...] += lax.dot_general(
        silu, w_ref[...],
        dimension_numbers=(((1,), (1,)), ((), ())),
        preferred_element_type=jnp.float32)                # (B, 2E) f32 accum

    @pl.when(k == pl.num_programs(0) - 1)
    def _():
        E = sp1_ref.shape[-1]
        emb = acc_ref[...].astype(sp1_ref.dtype)           # (B, 2E)
        sp1_ref[...] = (1.0 + emb[:, :E])[:, None, :]      # (B, 1, E)
        shift_ref[...] = emb[:, E:][:, None, :]            # (B, 1, E)


# ---------------------------------------------------------------------------
# Stage 2: out = x * (1 + scale) + shift   (pure VPU streaming)
# ---------------------------------------------------------------------------
def _modulate_kernel(x_ref, sp1_ref, shift_ref, o_ref):
    # x_ref: (1, TS, E); sp1/shift: (1, 1, E) -> sublane broadcast.
    o_ref[...] = (x_ref[...] * sp1_ref[...] + shift_ref[...]).astype(o_ref.dtype)


def _pick_tile(n, candidates):
    for t in candidates:
        if t <= n and n % t == 0:
            return t
    return n


def aura_flow_pre_final_block(x, conditioning_embedding, linear_weight,
                              *, seq_tile=512, k_tile=512):
    """x: (B, S, E); conditioning_embedding: (B, C); linear_weight: (2E, C) torch layout."""
    B, S, E = x.shape
    C = conditioning_embedding.shape[-1]
    assert linear_weight.shape == (2 * E, C)
    itemsize = jnp.dtype(x.dtype).itemsize

    # ---- stage 1: modulation vectors (computed once, tiny) -----------------
    tk = _pick_tile(C, (k_tile, 256, 128))
    n_k = C // tk
    sp1, shift = pl.pallas_call(
        _silu_linear_kernel,
        out_shape=(jax.ShapeDtypeStruct((B, 1, E), x.dtype),
                   jax.ShapeDtypeStruct((B, 1, E), x.dtype)),
        grid_spec=pltpu.PrefetchScalarGridSpec(
            num_scalar_prefetch=0,
            grid=(n_k,),
            in_specs=[
                pl.BlockSpec((B, tk), lambda k: (0, k)),          # cond
                pl.BlockSpec((2 * E, tk), lambda k: (0, k)),      # weight (2E, C)
            ],
            out_specs=[
                pl.BlockSpec((B, 1, E), lambda k: (0, 0, 0)),     # 1 + scale
                pl.BlockSpec((B, 1, E), lambda k: (0, 0, 0)),     # shift
            ],
            scratch_shapes=[pltpu.VMEM((B, 2 * E), jnp.float32)],
        ),
        compiler_params=pltpu.CompilerParams(
            dimension_semantics=("arbitrary",),
            vmem_limit_bytes=48 * 1024 * 1024),
        cost_estimate=pl.CostEstimate(
            flops=2 * B * C * 2 * E + 4 * B * C,
            transcendentals=B * C,
            bytes_accessed=(B * C + 2 * E * C + 2 * B * E) * itemsize),
    )(conditioning_embedding, linear_weight)

    # ---- stage 2: streamed modulation over the sequence --------------------
    ts = _pick_tile(S, (seq_tile, 256, 128, 64, 32, 16, 8))
    n_s = S // ts
    out = pl.pallas_call(
        _modulate_kernel,
        out_shape=jax.ShapeDtypeStruct((B, S, E), x.dtype),
        grid=(B, n_s),
        in_specs=[
            pl.BlockSpec((1, ts, E), lambda b, s: (b, s, 0)),
            pl.BlockSpec((1, 1, E), lambda b, s: (b, 0, 0)),
            pl.BlockSpec((1, 1, E), lambda b, s: (b, 0, 0)),
        ],
        out_specs=pl.BlockSpec((1, ts, E), lambda b, s: (b, s, 0)),
        compiler_params=pltpu.CompilerParams(
            dimension_semantics=("parallel", "parallel"),
            vmem_limit_bytes=48 * 1024 * 1024),
        cost_estimate=pl.CostEstimate(
            flops=2 * B * S * E,
            transcendentals=0,
            bytes_accessed=(2 * B * S * E + 2 * B * E) * itemsize),
    )(x, sp1, shift)
    return out


def _reference(x, cond, w):
    silu = cond * jax.nn.sigmoid(cond)
    emb = silu.astype(x.dtype) @ w.T
    E = x.shape[-1]
    scale, shift = emb[:, :E], emb[:, E:]
    return x * (1 + scale)[:, None, :] + shift[:, None, :]


if __name__ == "__main__":
    # Small shapes consistent with the module's forward.
    B, S, E, C = 2, 8, 32, 16   # batch, seq, embedding_dim, conditioning_embedding_dim

    key = jax.random.PRNGKey(0)
    kx, kc, kw = jax.random.split(key, 3)
    x = jax.random.normal(kx, (B, S, E), dtype=jnp.float32)
    cond = jax.random.normal(kc, (B, C), dtype=jnp.float32)
    # Linear(conditioning_embedding_dim, embedding_dim * 2, bias=False) weight,
    # stored in PyTorch (out_features, in_features) layout.
    weight = jax.random.normal(kw, (2 * E, C), dtype=jnp.float32) * 0.05

    out = aura_flow_pre_final_block(x, cond, weight)
    out = jax.block_until_ready(out)

    ref = _reference(x, cond, weight)
    assert out.shape == (B, S, E)
    assert jnp.allclose(out, ref, atol=1e-5, rtol=1e-5)

    print("KERNEL_OK")
</pallas_src>

<mosaic_0001>
module attributes {stable_mosaic.version = 11 : i64} {
  func.func @_silu_linear_kernel(%arg0: i32, %arg1: memref<2x16xf32, #tpu.memory_space<vmem>>, %arg2: memref<64x16xf32, #tpu.memory_space<vmem>>, %arg3: memref<2x1x32xf32, #tpu.memory_space<vmem>>, %arg4: memref<2x1x32xf32, #tpu.memory_space<vmem>>, %arg5: memref<2x64xf32, #tpu.memory_space<vmem>>) attributes {dimension_semantics = [#tpu.dimension_semantics<arbitrary>], iteration_bounds = array<i64: 1>, scalar_prefetch = 0 : i64, scratch_operands = 1 : i64, tpu.core_type = #tpu.core_type<tc>, window_params = [{transform_indices = @transform_0, window_bounds = array<i64: 2, 16>}, {transform_indices = @transform_1, window_bounds = array<i64: 64, 16>}, {pipeline_mode = #tpu.pipeline_mode<synchronous>, transform_indices = @transform_2, window_bounds = array<i64: 2, 1, 32>}, {pipeline_mode = #tpu.pipeline_mode<synchronous>, transform_indices = @transform_3, window_bounds = array<i64: 2, 1, 32>}]} {
    %c0_i32 = arith.constant 0 : i32
    %0 = arith.cmpi eq, %arg0, %c0_i32 : i32
    %1 = arith.extui %0 : i1 to i32
    %c0_i32_0 = arith.constant 0 : i32
    %2 = arith.cmpi ne, %1, %c0_i32_0 : i32
    scf.if %2 {
      %cst_11 = arith.constant 0.000000e+00 : f32
      %18 = vector.broadcast %cst_11 : f32 to vector<2x64xf32>
      %c0_12 = arith.constant 0 : index
      %c0_13 = arith.constant 0 : index
      %19 = vector.load %arg5[%c0_12, %c0_13] : memref<2x64xf32, #tpu.memory_space<vmem>>, vector<2x64xf32>
      tpu.vector_store %arg5[%c0_12, %c0_13], %18 {strides = array<i32>} : memref<2x64xf32, #tpu.memory_space<vmem>>, vector<2x64xf32>,
    } else {
    }
    %c0 = arith.constant 0 : index
    %c0_1 = arith.constant 0 : index
    %3 = vector.load %arg1[%c0, %c0_1] : memref<2x16xf32, #tpu.memory_space<vmem>>, vector<2x16xf32>
    %4 = arith.negf %3 : vector<2x16xf32>
    %5 = math.exp %4 : vector<2x16xf32>
    %cst = arith.constant 1.000000e+00 : f32
    %6 = vector.broadcast %cst : f32 to vector<2x16xf32>
    %7 = arith.addf %6, %5 : vector<2x16xf32>
    %8 = arith.divf %6, %7 : vector<2x16xf32>
    %9 = arith.mulf %3, %8 : vector<2x16xf32>
    %c0_2 = arith.constant 0 : index
    %c0_3 = arith.constant 0 : index
    %10 = vector.load %arg5[%c0_2, %c0_3] : memref<2x64xf32, #tpu.memory_space<vmem>>, vector<2x64xf32>
    %c0_4 = arith.constant 0 : index
    %c0_5 = arith.constant 0 : index
    %11 = vector.load %arg2[%c0_4, %c0_5] : memref<64x16xf32, #tpu.memory_space<vmem>>, vector<64x16xf32>
    %cst_6 = arith.constant dense<0.000000e+00> : vector<2x64xf32>
    %12 = tpu.matmul %9, %11, %cst_6 {dimension_numbers = #tpu.dot_dimension_numbers<[1], [1], [0], [0], [0, 0, 1, 0], [], []>} : vector<2x16xf32>, vector<64x16xf32>, vector<2x64xf32> -> vector<2x64xf32>
    %13 = arith.addf %10, %12 : vector<2x64xf32>
    %c0_7 = arith.constant 0 : index
    %c0_8 = arith.constant 0 : index
    %14 = vector.load %arg5[%c0_7, %c0_8] : memref<2x64xf32, #tpu.memory_space<vmem>>, vector<2x64xf32>
    tpu.vector_store %arg5[%c0_7, %c0_8], %13 {strides = array<i32>} : memref<2x64xf32, #tpu.memory_space<vmem>>, vector<2x64xf32>,
    %c0_i32_9 = arith.constant 0 : i32
    %15 = arith.cmpi eq, %arg0, %c0_i32_9 : i32
    %16 = arith.extui %15 : i1 to i32
    %c0_i32_10 = arith.constant 0 : i32
    %17 = arith.cmpi ne, %16, %c0_i32_10 : i32
    scf.if %17 {
      %c0_11 = arith.constant 0 : index
      %c0_12 = arith.constant 0 : index
      %18 = vector.load %arg5[%c0_11, %c0_12] : memref<2x64xf32, #tpu.memory_space<vmem>>, vector<2x64xf32>
      %19 = vector.extract_strided_slice %18 {offsets = [0, 0], sizes = [2, 32], strides = [1, 1]} : vector<2x64xf32> to vector<2x32xf32>
      %cst_13 = arith.constant 1.000000e+00 : f32
      %20 = vector.broadcast %cst_13 : f32 to vector<2x32xf32>
      %21 = arith.addf %20, %19 : vector<2x32xf32>
      %22 = vector.shape_cast %21 : vector<2x32xf32> to vector<2x1x32xf32>
      %c0_14 = arith.constant 0 : index
      %c0_15 = arith.constant 0 : index
      %c0_16 = arith.constant 0 : index
      %23 = vector.load %arg3[%c0_14, %c0_15, %c0_16] : memref<2x1x32xf32, #tpu.memory_space<vmem>>, vector<2x1x32xf32>
      tpu.vector_store %arg3[%c0_14, %c0_15, %c0_16], %22 {strides = array<i32>} : memref<2x1x32xf32, #tpu.memory_space<vmem>>, vector<2x1x32xf32>,
      %24 = vector.extract_strided_slice %18 {offsets = [0, 32], sizes = [2, 32], strides = [1, 1]} : vector<2x64xf32> to vector<2x32xf32>
      %25 = vector.shape_cast %24 : vector<2x32xf32> to vector<2x1x32xf32>
      %c0_17 = arith.constant 0 : index
      %c0_18 = arith.constant 0 : index
      %c0_19 = arith.constant 0 : index
      %26 = vector.load %arg4[%c0_17, %c0_18, %c0_19] : memref<2x1x32xf32, #tpu.memory_space<vmem>>, vector<2x1x32xf32>
      tpu.vector_store %arg4[%c0_17, %c0_18, %c0_19], %25 {strides = array<i32>} : memref<2x1x32xf32, #tpu.memory_space<vmem>>, vector<2x1x32xf32>,
    } else {
    }
    return
  }
  func.func @transform_0(%arg0: i32) -> (i32, i32) {
    %c0_i32 = arith.constant 0 : i32
    %c0_i32_0 = arith.constant 0 : i32
    return %c0_i32, %arg0 : i32, i32
  }
  func.func @transform_1(%arg0: i32) -> (i32, i32) {
    %c0_i32 = arith.constant 0 : i32
    %c0_i32_0 = arith.constant 0 : i32
    return %c0_i32, %arg0 : i32, i32
  }
  func.func @transform_2(%arg0: i32) -> (i32, i32, i32) {
    %c0_i32 = arith.constant 0 : i32
    %c0_i32_0 = arith.constant 0 : i32
    %c0_i32_1 = arith.constant 0 : i32
    %c0_i32_2 = arith.constant 0 : i32
    return %c0_i32, %c0_i32_0, %c0_i32_1 : i32, i32, i32
  }
  func.func @transform_3(%arg0: i32) -> (i32, i32, i32) {
    %c0_i32 = arith.constant 0 : i32
    %c0_i32_0 = arith.constant 0 : i32
    %c0_i32_1 = arith.constant 0 : i32
    %c0_i32_2 = arith.constant 0 : i32
    return %c0_i32, %c0_i32_0, %c0_i32_1 : i32, i32, i32
  }
}

</mosaic_0001>

<llo_original>
// kernel: tpu_custom_call.1
$region0: #{tpu_custom_call.1}
  #allocation0 [shape = 'u32[]', space=smem, size = 0x4, offset = 0x4, fixed_abs, tag = 'smem constant byte address 0x4 - core index']
  #allocation1 [shape = 'u32[144,128]{1,0:T(1,128)}', space=vmem, size = 0x12000, scoped, tag = 'internal scratch']
  #allocation2 [shape = 'f32[2,64]{1,0:T(2,128)}', space=vmem, size = 0x400, scoped, tag = 'scratch operand']
  %s0 = inlined_call_operand.vmem [shape: f32[2,16], index: 0, kind: input, shape index: {}]
  %s1 = inlined_call_operand.vmem [shape: f32[64,16], index: 1, kind: input, shape index: {}]
  %s2 = inlined_call_operand.hbm [shape: f32[2,1,32], index: 2, kind: output, shape index: {0}]
  %s3 = inlined_call_operand.hbm [shape: f32[2,1,32], index: 3, kind: output, shape index: {1}]
  %4 = xla_tuple %s2, %s3
  %s5 = sld [smem:[#allocation0]]
  $region34: #{tpu_custom_call.1} parent=0
    _
  %s7 = ssub.s32 1, %s5
  %s8 = scalar_select 0, %s7, %s5
  $region1: #{tpu_custom_call.1} parent=0
    #allocation3 [shape = 'u8[1024]{0}', space=vmem, size = 0x400, scoped, tag = 'output window, operand 0, single buffered']
    #allocation4 [shape = 's32[1]{0}', space=sflag, size = 0x4, scoped, tag = 'scoped memory for tpu_custom_call.1']
    #allocation5 [shape = 'u8[1024]{0}', space=vmem, size = 0x400, scoped, tag = 'output window, operand 1, single buffered']
    #allocation6 [shape = 's32[1]{0}', space=sflag, size = 0x4, scoped, tag = 'scoped memory for tpu_custom_call.1']
    %9 = vsyncpa [#allocation4], 0
    %10 = vsyncpa [#allocation6], 0
    // Predicated region
    $region2: #{tpu_custom_call.1} parent=1 // pred_check
      _
    $region3: #{tpu_custom_call.1} parent=1 // pred_check_branch
      %12 = sbr.rel (0) target = $region5
    $region4: #{tpu_custom_call.1} parent=1 // pred_region
      _
    $region5: #{tpu_custom_call.1} parent=1 // pred_fallthru
      _
    // Predicated region
    $region6: #{tpu_custom_call.1} parent=1 // pred_check
      _
    $region7: #{tpu_custom_call.1} parent=1 // pred_check_branch
      %14 = sbr.rel (0) target = $region9
    $region8: #{tpu_custom_call.1} parent=1 // pred_region
      _
    $region9: #{tpu_custom_call.1} parent=1 // pred_fallthru
      _
    %p15 = scmp.eq.s32.totalorder 0, 0
    // Predicated region
    $region10: #{tpu_custom_call.1} parent=1 // pred_check
      %p16 = pneg %p15
    $region11: #{tpu_custom_call.1} parent=1 // pred_check_branch
      %18 = sbr.rel (%p16) target = $region13
    $region12: #{tpu_custom_call.1} parent=1 // pred_region
      %vm19 = vcmask 517120
      %20 = vst.msk [vmem:[#allocation2] sm:$0x3] %vm19, 0.0
    $region13: #{tpu_custom_call.1} parent=1 // pred_fallthru
      _
    %v21 = vld [vmem:[%s0] sm:$0x3]
    %v22 = vxor.u32 %v21, 2147483648
    %v23 = vmul.f32 %v22, 1.442695
    %v24 = vpow.pop %v23
    %v25 = vadd.f32 %v24, 1.0
    %v26 = vrcp.pop %v25
    %v27 = vmul.f32 1.0, %v26
    %v28 = vmul.f32 %v21, %v27
    %v29 = vld [vmem:[#allocation2] sm:$0x3]
    %v30 = vld [vmem:[%s1] sm:$0xff]
    %v31 = vld [vmem:[%s1 + $0x8] sm:$0xff]
    %v32 = vld [vmem:[%s1 + $0x10] sm:$0xff]
    %v33 = vld [vmem:[%s1 + $0x18] sm:$0xff]
    %v34 = vld [vmem:[%s1 + $0x20] sm:$0xff]
    %v35 = vld [vmem:[%s1 + $0x28] sm:$0xff]
    %v36 = vld [vmem:[%s1 + $0x30] sm:$0xff]
    %v37 = vld [vmem:[%s1 + $0x38] sm:$0xff]
    %vm38 = vcmask 130048
    %v40 = vsel %vm38, %v28, 0
    %v43 = vsel %vm38, %v30, 0
    %v46 = vsel %vm38, %v31, 0
    %v49 = vsel %vm38, %v32, 0
    %v52 = vsel %vm38, %v33, 0
    %v55 = vsel %vm38, %v34, 0
    %v58 = vsel %vm38, %v35, 0
    %v61 = vsel %vm38, %v36, 0
    %v64 = vsel %vm38, %v37, 0
    %66 = vmatprep.subr.mxu0 0.0
    %67 = vmatpush1.xpose.msra.mxu0 %v43
    %68 = vmatprep.subr.mxu0 0.0
    %69 = vmatpush1.xpose.msra.mxu0 %v46
    %70 = vmatprep.subr.mxu0 0.0
    %71 = vmatpush1.xpose.msra.mxu0 %v49
    %72 = vmatprep.subr.mxu0 0.0
    %73 = vmatpush1.xpose.msra.mxu0 %v52
    %74 = vmatprep.subr.mxu0 0.0
    %75 = vmatpush1.xpose.msra.mxu0 %v55
    %76 = vmatprep.subr.mxu0 0.0
    %77 = vmatpush1.xpose.msra.mxu0 %v58
    %78 = vmatprep.subr.mxu0 0.0
    %79 = vmatpush1.xpose.msra.mxu0 %v61
    %80 = vmatprep.subr.mxu0 0.0
    %81 = vmatpush1.xpose.msra.mxu0 %v64
    %82 = vmatprep.subr.mxu0 0.0
    %83 = vmatpush1.xpose.msra.mxu0 0.0
    %84 = vmatprep.subr.mxu0 0.0
    %85 = vmatpush1.xpose.msra.mxu0 0.0
    %86 = vmatprep.subr.mxu0 0.0
    %87 = vmatpush1.xpose.msra.mxu0 0.0
    %88 = vmatprep.subr.mxu0 0.0
    %89 = vmatpush1.xpose.msra.mxu0 0.0
    %90 = vmatprep.subr.mxu0 0.0
    %91 = vmatpush1.xpose.msra.mxu0 0.0
    %92 = vmatprep.subr.mxu0 0.0
    %93 = vmatpush1.xpose.msra.mxu0 0.0
    %94 = vmatprep.subr.mxu0 0.0
    %95 = vmatpush1.xpose.msra.mxu0 0.0
    %96 = vmatprep.subr.mxu0 0.0
    %97 = vmatpush1.xpose.msra.mxu0 0.0
    %98 = vmatprep.subr.mxu0 0.0
    %99 = vmatpush1.xpose.msra.mxu0 0.0
    %100 = vmatprep.subr.mxu0 0.0
    %101 = vmatpush1.xpose.msra.mxu0 0.0
    %102 = vmatprep.subr.mxu0 0.0
    %103 = vmatpush1.xpose.msra.mxu0 0.0
    %104 = vmatprep.subr.mxu0 0.0
    %105 = vmatpush1.xpose.msra.mxu0 0.0
    %106 = vmatprep.subr.mxu0 0.0
    %107 = vmatpush1.xpose.msra.mxu0 0.0
    %108 = vmatprep.subr.mxu0 0.0
    %109 = vmatpush1.xpose.msra.mxu0 0.0
    %110 = vmatprep.subr.mxu0 0.0
    %111 = vmatpush1.xpose.msra.mxu0 0.0
    %112 = vmatprep.subr.mxu0 0.0
    %113 = vmatpush1.xpose.msra.mxu0 0.0
    %114 = vmatprep.subr.mxu0 0.0
    %115 = vmatpush1.xpose.msra.mxu0 0.0
    %116 = vmatprep.subr.mxu0 0.0
    %117 = vmatpush1.xpose.msra.mxu0 0.0
    %118 = vmatprep.subr.mxu0 0.0
    %119 = vmatpush1.xpose.msra.mxu0 0.0
    %120 = vmatprep.subr.mxu0 0.0
    %121 = vmatpush1.xpose.msra.mxu0 0.0
    %122 = vmatprep.subr.mxu0 0.0
    %123 = vmatpush1.xpose.msra.mxu0 0.0
    %124 = vmatprep.subr.mxu0 0.0
    %125 = vmatpush1.xpose.msra.mxu0 0.0
    %126 = vmatprep.subr.mxu0 0.0
    %127 = vmatpush1.xpose.msra.mxu0 0.0
    %128 = vmatprep.subr.mxu0 0.0
    %129 = vmatpush1.xpose.msra.mxu0 0.0
    %130 = vmatprep.mubr.f32.mxu0 0.0
    %131 = vmatmul.mubr.f32.gmra.mrb[0].mxu0 %v40
    %v132 = vpop.f32.mrb[0].mxu0
    %v133 = vadd.f32 0.0, %v132
    %v134 = vpop.f32.mrb[0].mxu0
    %135 = vdwg.mxu0
    %v136 = vadd.f32 %v29, %v133
    %vm137 = vcmask 517120
    %138 = vst.msk [vmem:[#allocation2] sm:$0x3] %vm137, %v136
    // Predicated region
    $region14: #{tpu_custom_call.1} parent=1 // pred_check
      %p139 = pneg %p15
    $region15: #{tpu_custom_call.1} parent=1 // pred_check_branch
      %141 = sbr.rel (%p139) target = $region17
    $region16: #{tpu_custom_call.1} parent=1 // pred_region
      %v142 = vld [vmem:[#allocation2] sm:$0x3]
      %v143 = vadd.f32 %v142, 1.0
      %v146 = vunpack.c.l.s4 1966171168
      %v147 = vunpack.c.0.s8 %v146
      %v148 = vlaneseq
      %v149 = vshrl.u32 %v148, 7
      %v150 = vsub.s32 %v147, %v149
      %v151 = vrot.slane %v143, %v150
      %v152 = vcombine.high %v151, %v151
      %v154 = vunpack.c.l.s4 1966171168
      %v155 = vunpack.c.0.s8 %v154
      %v156 = vlaneseq
      %v157 = vshrl.u32 %v156, 7
      %v158 = vsub.s32 %v155, %v157
      %v159 = vrot.slane %v151, %v158
      %v161 = vunpack.c.l.s4 1966171168
      %v162 = vunpack.c.0.s8 %v161
      %v163 = vlaneseq
      %v164 = vshrl.u32 %v163, 7
      %v165 = vsub.s32 %v162, %v164
      %v166 = vrot.slane %v152, %v165
      %vm169 = vcmask 253952
      %170 = vst.msk [vmem:[#allocation3] sm:$0x1] %vm169, %v159
      %171 = vst.msk [vmem:[#allocation3 + $0x1] sm:$0x1] %vm169, %v166
      %v174 = vunpack.c.l.s4 1966171168
      %v175 = vunpack.c.0.s8 %v174
      %v176 = vlaneseq
      %v177 = vshrl.u32 %v176, 7
      %v178 = vsub.s32 %v175, %v177
      %v179 = vrot.slane %v142, %v178
      %v180 = vcombine.high %v179, %v179
      %v182 = vunpack.c.l.s4 1966171168
      %v183 = vunpack.c.0.s8 %v182
      %v184 = vlaneseq
      %v185 = vshrl.u32 %v184, 7
      %v186 = vsub.s32 %v183, %v185
      %v187 = vrot.slane %v179, %v186
      %v189 = vunpack.c.l.s4 1966171168
      %v190 = vunpack.c.0.s8 %v189
      %v191 = vlaneseq
      %v192 = vshrl.u32 %v191, 7
      %v193 = vsub.s32 %v190, %v192
      %v194 = vrot.slane %v180, %v193
      %v195 = vlaneseq
      %v196 = vshrl.u32 %v195, 7
      %v197 = vsub.s32 0, %v196
      %v198 = vrot.slane %v187, %v197
      %v199 = vlaneseq
      %v200 = vshrl.u32 %v199, 7
      %v201 = vsub.s32 0, %v200
      %v202 = vrot.slane %v194, %v201
      %203 = vrot.lane.b32.xlu0 %v198, 96
      %v204 = vpop.permute.xlu0 %203
      %205 = vrot.lane.b32.xlu0 %v202, 96
      %v206 = vpop.permute.xlu0 %205
      %209 = vst.msk [vmem:[#allocation5] sm:$0x1] %vm169, %v204
      %210 = vst.msk [vmem:[#allocation5 + $0x1] sm:$0x1] %vm169, %v206
    $region17: #{tpu_custom_call.1} parent=1 // pred_fallthru
      _
    // Predicated region
    $region18: #{tpu_custom_call.1} parent=1 // pred_check
      _
    $region19: #{tpu_custom_call.1} parent=1 // pred_check_branch
      %212 = sbr.rel (0) target = $region21
    $region20: #{tpu_custom_call.1} parent=1 // pred_region
      %s214 = ssub.s32 32, 32
      %215 = vsyncadd [#allocation4], %s214
      %s216 = sshll.u32 [#allocation3], 4
      %s217 = int_to_ptr.vmem [resolvable:$true] %s216
      %222 = dma.vmem_to_hbm [thread:$0]  %s217, 32, %s2, [#allocation4], 16, 16, 1
    $region21: #{tpu_custom_call.1} parent=1 // pred_fallthru
      _
    // Predicated region
    $region22: #{tpu_custom_call.1} parent=1 // pred_check
      _
    $region23: #{tpu_custom_call.1} parent=1 // pred_check_branch
      %224 = sbr.rel (0) target = $region25
    $region24: #{tpu_custom_call.1} parent=1 // pred_region
      %s226 = ssub.s32 32, 32
      %227 = vsyncadd [#allocation6], %s226
      %s228 = sshll.u32 [#allocation5], 4
      %s229 = int_to_ptr.vmem [resolvable:$true] %s228
      %234 = dma.vmem_to_hbm [thread:$0]  %s229, 32, %s3, [#allocation6], 16, 16, 1
    $region25: #{tpu_custom_call.1} parent=1 // pred_fallthru
      _
    // Predicated region
    $region26: #{tpu_custom_call.1} parent=1 // pred_check
      _
    $region27: #{tpu_custom_call.1} parent=1 // pred_check_branch
      %236 = sbr.rel (0) target = $region29
    $region28: #{tpu_custom_call.1} parent=1 // pred_region
      %237 = dma.done [#allocation4], 32
    $region29: #{tpu_custom_call.1} parent=1 // pred_fallthru
      _
    // Predicated region
    $region30: #{tpu_custom_call.1} parent=1 // pred_check
      _
    $region31: #{tpu_custom_call.1} parent=1 // pred_check_branch
      %239 = sbr.rel (0) target = $region33
    $region32: #{tpu_custom_call.1} parent=1 // pred_region
      %240 = dma.done [#allocation6], 32
    $region33: #{tpu_custom_call.1} parent=1 // pred_fallthru
      _
    %241 = vsyncpa [#allocation4], 1
    %242 = vsyncpa [#allocation6], 1

</llo_original>
